<compile_context>
chip_gen: v6e
topology: v6e:2x2x1
jax: 0.10.0
libtpu: 0.0.40
codegen_flags: <defaults>
</compile_context>

<pallas_src>
import jax
import jax.numpy as jnp
from jax.experimental import pallas as pl
from jax.experimental.pallas import tpu as pltpu


def _round_up(n: int, m: int) -> int:
    return ((n + m - 1) // m) * m


def _pick_batch_tile(batch: int, block_batch: int) -> int:
    """Batch tile on the lane axis: multiple of 128, capped at block_batch."""
    full = _round_up(batch, 128)
    tb = min(_round_up(block_batch, 128), full)
    # v7x has 2 TensorCores: if one tile would swallow the whole batch but it
    # can be split into two >=128-lane tiles, halve it so the "parallel" grid
    # axis has >= 2 steps (one per core).  Harmless on v5e/v6e.
    if tb == full and tb >= 256:
        tb = _round_up(tb // 2, 128)
    return tb


def _make_mlp_kernel(num_hidden: int):
    """Fused MLP kernel in feature-major ("batch on lanes") layout.

    Ref order: (x, w1, b1, ..., wN, bN, wo_col, bo, out)
      x:      (d_in, TB)                 activations, batch on the lane axis
      w_i:    (out_features, in_features)  native PyTorch layout (no transpose)
      b_i:    (out_features, 1)          broadcasts along lanes
      wo_col: (H_last, 1)                1-wide head as a column
      bo:     (1,) float32 scalar in SMEM
      out:    (1, TB)                    lane-dense row -> unmasked stores
    """

    def kernel(*refs):
        x_ref = refs[0]
        bo_ref = refs[-2]
        out_ref = refs[-1]

        h = x_ref[...]                                   # (d_in, TB)
        idx = 1
        for _ in range(num_hidden):
            w = refs[idx][...]                           # (d_out, d_in)
            b = refs[idx + 1][...]                       # (d_out, 1), f32
            idx += 2
            # MXU matmul with lane-dense result; bias + ReLU on the VPU in f32
            # (v5e has no bf16 VPU, so elementwise work never goes sub-32-bit).
            h = jnp.dot(w, h.astype(w.dtype),
                        preferred_element_type=jnp.float32)   # (d_out, TB) f32
            h = jnp.maximum(h + b, 0.0)

        # 1-wide head: VPU broadcast-multiply + sublane (XLU) reduce -> (1, TB)
        # lane-dense row; MXU stays out of this tiny op.
        wo = refs[idx][...]                              # (H_last, 1), f32
        out_ref[...] = jnp.sum(h * wo, axis=0, keepdims=True) + bo_ref[0]

    return kernel


def regression_model_forward(x, params, *, block_batch=2048, mxu_dtype=jnp.float32):
    """Forward pass of RegressionModel.

    x:      (batch, in_features)
    params: ((w1, b1), ..., (wN, bN), (wo, bo)) in PyTorch nn.Linear layout,
            i.e. w_i: (out_features, in_features), b_i: (out_features,).
    Returns (batch, 1) float32.

    mxu_dtype: dtype of the jnp.dot operands (weights + activations fed to the
      MXU).  Use jnp.bfloat16 on v6e/v7x to halve weight/activation DMA bytes
      and double vreg packing; keep float32 on v5e or when strict parity with
      the float32 reference is required.  Accumulation is always float32.
    """
    x = x.astype(jnp.float32)
    batch, d_in = x.shape
    num_hidden = len(params) - 1

    # One-time layout prep outside the kernel (plain XLA ops, hoisted under jit):
    #   * x transposed to (d_in, batch) -> batch on the 128-wide lane axis
    #   * hidden weights kept in native (out, in) layout (kernel does W @ h)
    #   * biases as (out, 1) columns (broadcast along lanes, stay f32)
    #   * 1-wide head as a (H_last, 1) column + scalar bias in SMEM
    hidden = [
        (w.astype(mxu_dtype), b.reshape(-1, 1).astype(jnp.float32))
        for (w, b) in params[:-1]
    ]
    wo, bo = params[-1]
    wo_col = wo.reshape(-1, 1).astype(jnp.float32)       # (H_last, 1)
    bo_s = bo.reshape(1).astype(jnp.float32)             # (1,) SMEM scalar

    tb = _pick_batch_tile(batch, block_batch)
    padded = _round_up(batch, tb)
    xt = x.T                                             # (d_in, batch)
    if padded != batch:
        xt = jnp.pad(xt, ((0, 0), (0, padded - batch)))
    xt = xt.astype(mxu_dtype)
    grid = (padded // tb,)

    flat_in = [xt]
    in_specs = [pl.BlockSpec((d_in, tb), lambda i: (0, i))]
    for (w, b) in hidden:
        flat_in += [w, b]
        in_specs += [
            pl.BlockSpec(w.shape, lambda i: (0, 0)),      # weights VMEM-resident
            pl.BlockSpec(b.shape, lambda i: (0, 0)),
        ]
    flat_in += [wo_col, bo_s]
    in_specs += [
        pl.BlockSpec(wo_col.shape, lambda i: (0, 0)),
        pl.BlockSpec(memory_space=pltpu.MemorySpace.SMEM),  # scalar head bias
    ]

    out = pl.pallas_call(
        _make_mlp_kernel(num_hidden),
        out_shape=jax.ShapeDtypeStruct((1, padded), jnp.float32),
        grid=grid,
        in_specs=in_specs,
        out_specs=pl.BlockSpec((1, tb), lambda i: (0, i)),
        compiler_params=pltpu.CompilerParams(
            dimension_semantics=("parallel",),            # megacore sharding on v7x
        ),
    )(*flat_in)

    # Padded columns hold garbage (ReLU of bias chains) -- always slice here.
    return out[0, :batch].reshape(batch, 1)


def _init_linear(key, in_features, out_features):
    """PyTorch-style init: U(-1/sqrt(fan_in), 1/sqrt(fan_in)); PyTorch layout."""
    kw, kb = jax.random.split(key)
    bound = 1.0 / (in_features ** 0.5)
    w = jax.random.uniform(kw, (out_features, in_features), jnp.float32,
                           minval=-bound, maxval=bound)
    b = jax.random.uniform(kb, (out_features,), jnp.float32,
                           minval=-bound, maxval=bound)
    return w, b


def _reference_forward(x, params):
    h = x
    for w, b in params[:-1]:
        h = jnp.maximum(h @ w.T + b, 0.0)
    wo, bo = params[-1]
    return h @ wo.T + bo


if __name__ == "__main__":
    # RegressionModel(in_shape=8, hidden_shape=[32, 32]).
    in_shape = 8
    hidden_shape = (32, 32)

    key = jax.random.PRNGKey(0)
    k_x, k1, k2, k3 = jax.random.split(key, 4)

    params = (
        _init_linear(k1, in_shape, hidden_shape[0]),
        _init_linear(k2, hidden_shape[0], hidden_shape[1]),
        _init_linear(k3, hidden_shape[1], 1),
    )

    # Small batch (single lane tile, single grid step).
    batch = 16
    x = jax.random.normal(k_x, (batch, in_shape), jnp.float32)
    out = jax.block_until_ready(regression_model_forward(x, params))
    ref = _reference_forward(x, params)
    assert out.shape == (batch, 1), out.shape
    assert jnp.allclose(out, ref, atol=1e-5, rtol=1e-5)

    # Non-tile-aligned batch (exercises the padding / slice path).
    batch2 = 13
    x2 = jax.random.normal(k_x, (batch2, in_shape), jnp.float32)
    out2 = jax.block_until_ready(regression_model_forward(x2, params))
    ref2 = _reference_forward(x2, params)
    assert out2.shape == (batch2, 1), out2.shape
    assert jnp.allclose(out2, ref2, atol=1e-5, rtol=1e-5)

    # Larger batch: >= 2 grid steps (both v7x TensorCores get work) + padding.
    batch3 = 300
    x3 = jax.random.normal(k_x, (batch3, in_shape), jnp.float32)
    out3 = jax.block_until_ready(regression_model_forward(x3, params))
    ref3 = _reference_forward(x3, params)
    assert out3.shape == (batch3, 1), out3.shape
    assert jnp.allclose(out3, ref3, atol=1e-5, rtol=1e-5)

    print("KERNEL_OK")
</pallas_src>

<mosaic_0001>
module attributes {stable_mosaic.version = 11 : i64} {
  func.func @kernel(%arg0: i32, %arg1: memref<8x128xf32, #tpu.memory_space<vmem>>, %arg2: memref<32x8xf32, #tpu.memory_space<vmem>>, %arg3: memref<32x1xf32, #tpu.memory_space<vmem>>, %arg4: memref<32x32xf32, #tpu.memory_space<vmem>>, %arg5: memref<32x1xf32, #tpu.memory_space<vmem>>, %arg6: memref<32x1xf32, #tpu.memory_space<vmem>>, %arg7: memref<1xf32, #tpu.memory_space<smem>>, %arg8: memref<1x128xf32, #tpu.memory_space<vmem>>) attributes {dimension_semantics = [#tpu.dimension_semantics<parallel>], iteration_bounds = array<i64: 1>, scalar_prefetch = 0 : i64, scratch_operands = 0 : i64, tpu.core_type = #tpu.core_type<tc>, window_params = [{transform_indices = @transform_0, window_bounds = array<i64: 8, 128>}, {pipeline_mode = #tpu.pipeline_mode<synchronous>, transform_indices = @transform_1, window_bounds = array<i64: 32, 8>}, {pipeline_mode = #tpu.pipeline_mode<synchronous>, transform_indices = @transform_2, window_bounds = array<i64: 32, 1>}, {pipeline_mode = #tpu.pipeline_mode<synchronous>, transform_indices = @transform_3, window_bounds = array<i64: 32, 32>}, {pipeline_mode = #tpu.pipeline_mode<synchronous>, transform_indices = @transform_4, window_bounds = array<i64: 32, 1>}, {pipeline_mode = #tpu.pipeline_mode<synchronous>, transform_indices = @transform_5, window_bounds = array<i64: 32, 1>}, {transform_indices = @transform_6, window_bounds = array<i64: 1>}, {transform_indices = @transform_7, window_bounds = array<i64: 1, 128>}]} {
    %c0 = arith.constant 0 : index
    %c0_0 = arith.constant 0 : index
    %0 = vector.load %arg1[%c0, %c0_0] : memref<8x128xf32, #tpu.memory_space<vmem>>, vector<8x128xf32>
    %c0_1 = arith.constant 0 : index
    %c0_2 = arith.constant 0 : index
    %1 = vector.load %arg2[%c0_1, %c0_2] : memref<32x8xf32, #tpu.memory_space<vmem>>, vector<32x8xf32>
    %c0_3 = arith.constant 0 : index
    %c0_4 = arith.constant 0 : index
    %2 = vector.load %arg3[%c0_3, %c0_4] : memref<32x1xf32, #tpu.memory_space<vmem>>, vector<32x1xf32>
    %cst = arith.constant dense<0.000000e+00> : vector<32x128xf32>
    %3 = tpu.matmul %1, %0, %cst {dimension_numbers = #tpu.dot_dimension_numbers<[1], [0], [0], [1], [0, 0, 1, 1], [], []>} : vector<32x8xf32>, vector<8x128xf32>, vector<32x128xf32> -> vector<32x128xf32>
    %4 = vector.broadcast %2 : vector<32x1xf32> to vector<32x128xf32>
    %5 = arith.addf %3, %4 : vector<32x128xf32>
    %cst_5 = arith.constant 0.000000e+00 : f32
    %6 = vector.broadcast %cst_5 : f32 to vector<32x128xf32>
    %7 = arith.maximumf %5, %6 : vector<32x128xf32>
    %c0_6 = arith.constant 0 : index
    %c0_7 = arith.constant 0 : index
    %8 = vector.load %arg4[%c0_6, %c0_7] : memref<32x32xf32, #tpu.memory_space<vmem>>, vector<32x32xf32>
    %c0_8 = arith.constant 0 : index
    %c0_9 = arith.constant 0 : index
    %9 = vector.load %arg5[%c0_8, %c0_9] : memref<32x1xf32, #tpu.memory_space<vmem>>, vector<32x1xf32>
    %cst_10 = arith.constant dense<0.000000e+00> : vector<32x128xf32>
    %10 = tpu.matmul %8, %7, %cst_10 {dimension_numbers = #tpu.dot_dimension_numbers<[1], [0], [0], [1], [0, 0, 1, 1], [], []>} : vector<32x32xf32>, vector<32x128xf32>, vector<32x128xf32> -> vector<32x128xf32>
    %11 = vector.broadcast %9 : vector<32x1xf32> to vector<32x128xf32>
    %12 = arith.addf %10, %11 : vector<32x128xf32>
    %cst_11 = arith.constant 0.000000e+00 : f32
    %13 = vector.broadcast %cst_11 : f32 to vector<32x128xf32>
    %14 = arith.maximumf %12, %13 : vector<32x128xf32>
    %c0_12 = arith.constant 0 : index
    %c0_13 = arith.constant 0 : index
    %15 = vector.load %arg6[%c0_12, %c0_13] : memref<32x1xf32, #tpu.memory_space<vmem>>, vector<32x1xf32>
    %16 = vector.broadcast %15 : vector<32x1xf32> to vector<32x128xf32>
    %17 = arith.mulf %14, %16 : vector<32x128xf32>
    %cst_14 = arith.constant dense<0.000000e+00> : vector<128xf32>
    %18 = vector.multi_reduction <add>, %17, %cst_14 [0] : vector<32x128xf32> to vector<128xf32>
    %19 = vector.shape_cast %18 : vector<128xf32> to vector<1x128xf32>
    %c0_15 = arith.constant 0 : index
    %20 = memref.load %arg7[%c0_15] : memref<1xf32, #tpu.memory_space<smem>>
    %21 = vector.broadcast %20 : f32 to vector<1x128xf32>
    %22 = arith.addf %19, %21 : vector<1x128xf32>
    %c0_16 = arith.constant 0 : index
    %c0_17 = arith.constant 0 : index
    %23 = vector.load %arg8[%c0_16, %c0_17] : memref<1x128xf32, #tpu.memory_space<vmem>>, vector<1x128xf32>
    tpu.vector_store %arg8[%c0_16, %c0_17], %22 {strides = array<i32>} : memref<1x128xf32, #tpu.memory_space<vmem>>, vector<1x128xf32>,
    return
  }
  func.func @transform_0(%arg0: i32) -> (i32, i32) {
    %c0_i32 = arith.constant 0 : i32
    %c0_i32_0 = arith.constant 0 : i32
    return %c0_i32, %arg0 : i32, i32
  }
  func.func @transform_1(%arg0: i32) -> (i32, i32) {
    %c0_i32 = arith.constant 0 : i32
    %c0_i32_0 = arith.constant 0 : i32
    %c0_i32_1 = arith.constant 0 : i32
    return %c0_i32, %c0_i32_0 : i32, i32
  }
  func.func @transform_2(%arg0: i32) -> (i32, i32) {
    %c0_i32 = arith.constant 0 : i32
    %c0_i32_0 = arith.constant 0 : i32
    %c0_i32_1 = arith.constant 0 : i32
    return %c0_i32, %c0_i32_0 : i32, i32
  }
  func.func @transform_3(%arg0: i32) -> (i32, i32) {
    %c0_i32 = arith.constant 0 : i32
    %c0_i32_0 = arith.constant 0 : i32
    %c0_i32_1 = arith.constant 0 : i32
    return %c0_i32, %c0_i32_0 : i32, i32
  }
  func.func @transform_4(%arg0: i32) -> (i32, i32) {
    %c0_i32 = arith.constant 0 : i32
    %c0_i32_0 = arith.constant 0 : i32
    %c0_i32_1 = arith.constant 0 : i32
    return %c0_i32, %c0_i32_0 : i32, i32
  }
  func.func @transform_5(%arg0: i32) -> (i32, i32) {
    %c0_i32 = arith.constant 0 : i32
    %c0_i32_0 = arith.constant 0 : i32
    %c0_i32_1 = arith.constant 0 : i32
    return %c0_i32, %c0_i32_0 : i32, i32
  }
  func.func @transform_6(%arg0: i32) -> i32 {
    %c0_i32 = arith.constant 0 : i32
    %c0_i32_0 = arith.constant 0 : i32
    return %c0_i32 : i32
  }
  func.func @transform_7(%arg0: i32) -> (i32, i32) {
    %c0_i32 = arith.constant 0 : i32
    %c0_i32_0 = arith.constant 0 : i32
    return %c0_i32, %arg0 : i32, i32
  }
}

</mosaic_0001>

<llo_original>
// kernel: tpu_custom_call.1
$region0: #{tpu_custom_call.1}
  #allocation0 [shape = 'u32[]', space=smem, size = 0x4, offset = 0x4, fixed_abs, tag = 'smem constant byte address 0x4 - core index']
  #allocation1 [shape = 'u32[144,128]{1,0:T(1,128)}', space=vmem, size = 0x12000, scoped, tag = 'internal scratch']
  #allocation2 [shape = 'f32[1]{0:T(128)S(6)}', space=smem, size = 0x200, scoped, tag = 'scoped memory for tpu_custom_call.1']
  %s0 = inlined_call_operand.vmem [shape: f32[8,128], index: 0, kind: input, shape index: {}]
  %s1 = inlined_call_operand.vmem [shape: f32[32,8], index: 1, kind: input, shape index: {}]
  %s2 = inlined_call_operand.vmem [shape: f32[32,1], index: 2, kind: input, shape index: {}]
  %s3 = inlined_call_operand.vmem [shape: f32[32,32], index: 3, kind: input, shape index: {}]
  %s4 = inlined_call_operand.vmem [shape: f32[32,1], index: 4, kind: input, shape index: {}]
  %s5 = inlined_call_operand.vmem [shape: f32[32,1], index: 5, kind: input, shape index: {}]
  %s6 = inlined_call_operand.<no memory space> [shape: f32[1], index: 6, kind: input, shape index: {}]
  %s7 = inlined_call_operand.hbm [shape: f32[1,128], index: 7, kind: output, shape index: {}]
  %s8 = sld [smem:[#allocation0]]
  $region38: #{tpu_custom_call.1} parent=0
    _
  %s10 = ssub.s32 1, %s8
  %s11 = scalar_select 0, %s10, %s8
  %12 = sst [smem:[#allocation2]] %s6
  $region1: #{tpu_custom_call.1} parent=0
    #allocation3 [shape = 'u8[512]{0}', space=vmem, size = 0x400, scoped, tag = 'output window, operand 0, single buffered']
    #allocation4 [shape = 's32[1]{0}', space=sflag, size = 0x4, scoped, tag = 'scoped memory for tpu_custom_call.1']
    %13 = vsyncpa [#allocation4], 0
    // Predicated region
    $region2: #{tpu_custom_call.1} parent=1 // pred_check
      _
    $region3: #{tpu_custom_call.1} parent=1 // pred_check_branch
      %15 = sbr.rel (0) target = $region5
    $region4: #{tpu_custom_call.1} parent=1 // pred_region
      _
    $region5: #{tpu_custom_call.1} parent=1 // pred_fallthru
      _
    // Predicated region
    $region6: #{tpu_custom_call.1} parent=1 // pred_check
      _
    $region7: #{tpu_custom_call.1} parent=1 // pred_check_branch
      %17 = sbr.rel (0) target = $region9
    $region8: #{tpu_custom_call.1} parent=1 // pred_region
      _
    $region9: #{tpu_custom_call.1} parent=1 // pred_fallthru
      _
    // Predicated region
    $region10: #{tpu_custom_call.1} parent=1 // pred_check
      _
    $region11: #{tpu_custom_call.1} parent=1 // pred_check_branch
      %19 = sbr.rel (0) target = $region13
    $region12: #{tpu_custom_call.1} parent=1 // pred_region
      _
    $region13: #{tpu_custom_call.1} parent=1 // pred_fallthru
      _
    // Predicated region
    $region14: #{tpu_custom_call.1} parent=1 // pred_check
      _
    $region15: #{tpu_custom_call.1} parent=1 // pred_check_branch
      %21 = sbr.rel (0) target = $region17
    $region16: #{tpu_custom_call.1} parent=1 // pred_region
      _
    $region17: #{tpu_custom_call.1} parent=1 // pred_fallthru
      _
    // Predicated region
    $region18: #{tpu_custom_call.1} parent=1 // pred_check
      _
    $region19: #{tpu_custom_call.1} parent=1 // pred_check_branch
      %23 = sbr.rel (0) target = $region21
    $region20: #{tpu_custom_call.1} parent=1 // pred_region
      _
    $region21: #{tpu_custom_call.1} parent=1 // pred_fallthru
      _
    // Predicated region
    $region22: #{tpu_custom_call.1} parent=1 // pred_check
      _
    $region23: #{tpu_custom_call.1} parent=1 // pred_check_branch
      %25 = sbr.rel (0) target = $region25
    $region24: #{tpu_custom_call.1} parent=1 // pred_region
      _
    $region25: #{tpu_custom_call.1} parent=1 // pred_fallthru
      _
    // Predicated region
    $region26: #{tpu_custom_call.1} parent=1 // pred_check
      _
    $region27: #{tpu_custom_call.1} parent=1 // pred_check_branch
      %27 = sbr.rel (0) target = $region29
    $region28: #{tpu_custom_call.1} parent=1 // pred_region
      _
    $region29: #{tpu_custom_call.1} parent=1 // pred_fallthru
      _
    %v28 = vld [vmem:[%s0] sm:$0xff]
    %v29 = vld [vmem:[%s1] sm:$0xff]
    %v30 = vld [vmem:[%s1 + $0x8] sm:$0xff]
    %v31 = vld [vmem:[%s1 + $0x10] sm:$0xff]
    %v32 = vld [vmem:[%s1 + $0x18] sm:$0xff]
    %v33 = vld [vmem:[%s2] sm:$0xff]
    %v34 = vld [vmem:[%s2 + $0x8] sm:$0xff]
    %v35 = vld [vmem:[%s2 + $0x10] sm:$0xff]
    %v36 = vld [vmem:[%s2 + $0x18] sm:$0xff]
    %38 = vset.pattern.permute.xlu0 0
    %39 = vperm.xlu0 %38, %v33
    %v40 = vpop.permute.xlu0 %39
    %43 = vset.pattern.permute.xlu0 0
    %44 = vperm.xlu0 %43, %v34
    %v45 = vpop.permute.xlu0 %44
    %48 = vset.pattern.permute.xlu0 0
    %49 = vperm.xlu0 %48, %v35
    %v50 = vpop.permute.xlu0 %49
    %53 = vset.pattern.permute.xlu0 0
    %54 = vperm.xlu0 %53, %v36
    %v55 = vpop.permute.xlu0 %54
    %vm57 = vcmask 64512
    %v59 = vsel %vm57, %v29, 0
    %v62 = vsel %vm57, %v30, 0
    %v65 = vsel %vm57, %v31, 0
    %v68 = vsel %vm57, %v32, 0
    %70 = vmatprep.subr.mxu0 0.0
    %71 = vmatpush1.msra.mxu0 0.0
    %72 = vmatprep.subr.mxu0 0.0
    %73 = vmatpush1.msra.mxu0 0.0
    %74 = vmatprep.subr.mxu0 0.0
    %75 = vmatpush1.msra.mxu0 0.0
    %76 = vmatprep.subr.mxu0 0.0
    %77 = vmatpush1.msra.mxu0 0.0
    %78 = vmatprep.subr.mxu0 0.0
    %79 = vmatpush1.msra.mxu0 0.0
    %80 = vmatprep.subr.mxu0 0.0
    %81 = vmatpush1.msra.mxu0 0.0
    %82 = vmatprep.subr.mxu0 0.0
    %83 = vmatpush1.msra.mxu0 0.0
    %84 = vmatprep.subr.mxu0 0.0
    %85 = vmatpush1.msra.mxu0 0.0
    %86 = vmatprep.subr.mxu0 0.0
    %87 = vmatpush1.msra.mxu0 0.0
    %88 = vmatprep.subr.mxu0 0.0
    %89 = vmatpush1.msra.mxu0 0.0
    %90 = vmatprep.subr.mxu0 0.0
    %91 = vmatpush1.msra.mxu0 0.0
    %92 = vmatprep.subr.mxu0 0.0
    %93 = vmatpush1.msra.mxu0 0.0
    %94 = vmatprep.subr.mxu0 0.0
    %95 = vmatpush1.msra.mxu0 0.0
    %96 = vmatprep.subr.mxu0 0.0
    %97 = vmatpush1.msra.mxu0 0.0
    %98 = vmatprep.subr.mxu0 0.0
    %99 = vmatpush1.msra.mxu0 0.0
    %100 = vmatprep.subr.mxu0 0.0
    %101 = vmatpush1.msra.mxu0 %v28
    %102 = vmatprep.subr.mxu0 0.0
    %103 = vmatpush2.msra.mxu0 0.0
    %104 = vmatprep.subr.mxu0 0.0
    %105 = vmatpush2.msra.mxu0 0.0
    %106 = vmatprep.subr.mxu0 0.0
    %107 = vmatpush2.msra.mxu0 0.0
    %108 = vmatprep.subr.mxu0 0.0
    %109 = vmatpush2.msra.mxu0 0.0
    %110 = vmatprep.subr.mxu0 0.0
    %111 = vmatpush2.msra.mxu0 0.0
    %112 = vmatprep.subr.mxu0 0.0
    %113 = vmatpush2.msra.mxu0 0.0
    %114 = vmatprep.subr.mxu0 0.0
    %115 = vmatpush2.msra.mxu0 0.0
    %116 = vmatprep.subr.mxu0 0.0
    %117 = vmatpush2.msra.mxu0 0.0
    %118 = vmatprep.subr.mxu0 0.0
    %119 = vmatpush2.msra.mxu0 0.0
    %120 = vmatprep.subr.mxu0 0.0
    %121 = vmatpush2.msra.mxu0 0.0
    %122 = vmatprep.subr.mxu0 0.0
    %123 = vmatpush2.msra.mxu0 0.0
    %124 = vmatprep.subr.mxu0 0.0
    %125 = vmatpush2.msra.mxu0 0.0
    %126 = vmatprep.subr.mxu0 0.0
    %127 = vmatpush2.msra.mxu0 0.0
    %128 = vmatprep.subr.mxu0 0.0
    %129 = vmatpush2.msra.mxu0 0.0
    %130 = vmatprep.subr.mxu0 0.0
    %131 = vmatpush2.msra.mxu0 0.0
    %132 = vmatprep.subr.mxu0 0.0
    %133 = vmatpush2.msra.mxu0 0.0
    %134 = vmatprep.mubr.f32.mxu0 0.0
    %135 = vmatmul.mubr.f32.gmra.mxu0 %v59
    %v136 = vpop.f32.mrf.mxu0
    %v137 = vadd.f32 %v40, %v136
    %v138 = vpop.f32.mrf.mxu0
    %139 = vmatprep.mubr.f32.mxu0 0.0
    %140 = vmatmul.mubr.f32.gmra.mxu0 %v62
    %v141 = vpop.f32.mrf.mxu0
    %v142 = vadd.f32 %v45, %v141
    %v143 = vpop.f32.mrf.mxu0
    %144 = vmatprep.mubr.f32.mxu0 0.0
    %145 = vmatmul.mubr.f32.gmra.mxu0 %v65
    %v146 = vpop.f32.mrf.mxu0
    %v147 = vadd.f32 %v50, %v146
    %v148 = vpop.f32.mrf.mxu0
    %149 = vmatprep.mubr.f32.mxu0 0.0
    %150 = vmatmul.mubr.f32.gmra.mxu0 %v68
    %v151 = vpop.f32.mrf.mxu0
    %v152 = vadd.f32 %v55, %v151
    %v153 = vpop.f32.mrf.mxu0
    %154 = vdwg.mxu0
    %v155 = vmax.f32 %v137, 0.0
    %v156 = vmax.f32 %v142, 0.0
    %v157 = vmax.f32 %v147, 0.0
    %v158 = vmax.f32 %v152, 0.0
    %v159 = vld [vmem:[%s3] sm:$0xff]
    %v160 = vld [vmem:[%s3 + $0x8] sm:$0xff]
    %v161 = vld [vmem:[%s3 + $0x10] sm:$0xff]
    %v162 = vld [vmem:[%s3 + $0x18] sm:$0xff]
    %v163 = vld [vmem:[%s4] sm:$0xff]
    %v164 = vld [vmem:[%s4 + $0x8] sm:$0xff]
    %v165 = vld [vmem:[%s4 + $0x10] sm:$0xff]
    %v166 = vld [vmem:[%s4 + $0x18] sm:$0xff]
    %168 = vset.pattern.permute.xlu0 0
    %169 = vperm.xlu0 %168, %v163
    %v170 = vpop.permute.xlu0 %169
    %173 = vset.pattern.permute.xlu0 0
    %174 = vperm.xlu0 %173, %v164
    %v175 = vpop.permute.xlu0 %174
    %178 = vset.pattern.permute.xlu0 0
    %179 = vperm.xlu0 %178, %v165
    %v180 = vpop.permute.xlu0 %179
    %183 = vset.pattern.permute.xlu0 0
    %184 = vperm.xlu0 %183, %v166
    %v185 = vpop.permute.xlu0 %184
    %vm187 = vcmask 261120
    %v189 = vsel %vm187, %v159, 0
    %v192 = vsel %vm187, %v160, 0
    %v195 = vsel %vm187, %v161, 0
    %v198 = vsel %vm187, %v162, 0
    %200 = vmatprep.subr.mxu0 0.0
    %201 = vmatpush1.msra.mxu0 0.0
    %202 = vmatprep.subr.mxu0 0.0
    %203 = vmatpush1.msra.mxu0 0.0
    %204 = vmatprep.subr.mxu0 0.0
    %205 = vmatpush1.msra.mxu0 0.0
    %206 = vmatprep.subr.mxu0 0.0
    %207 = vmatpush1.msra.mxu0 0.0
    %208 = vmatprep.subr.mxu0 0.0
    %209 = vmatpush1.msra.mxu0 0.0
    %210 = vmatprep.subr.mxu0 0.0
    %211 = vmatpush1.msra.mxu0 0.0
    %212 = vmatprep.subr.mxu0 0.0
    %213 = vmatpush1.msra.mxu0 0.0
    %214 = vmatprep.subr.mxu0 0.0
    %215 = vmatpush1.msra.mxu0 0.0
    %216 = vmatprep.subr.mxu0 0.0
    %217 = vmatpush1.msra.mxu0 0.0
    %218 = vmatprep.subr.mxu0 0.0
    %219 = vmatpush1.msra.mxu0 0.0
    %220 = vmatprep.subr.mxu0 0.0
    %221 = vmatpush1.msra.mxu0 0.0
    %222 = vmatprep.subr.mxu0 0.0
    %223 = vmatpush1.msra.mxu0 0.0
    %224 = vmatprep.subr.mxu0 0.0
    %225 = vmatpush1.msra.mxu0 %v158
    %226 = vmatprep.subr.mxu0 0.0
    %227 = vmatpush1.msra.mxu0 %v157
    %228 = vmatprep.subr.mxu0 0.0
    %229 = vmatpush1.msra.mxu0 %v156
    %230 = vmatprep.subr.mxu0 0.0
    %231 = vmatpush1.msra.mxu0 %v155
    %232 = vmatprep.subr.mxu0 0.0
    %233 = vmatpush2.msra.mxu0 0.0
    %234 = vmatprep.subr.mxu0 0.0
    %235 = vmatpush2.msra.mxu0 0.0
    %236 = vmatprep.subr.mxu0 0.0
    %237 = vmatpush2.msra.mxu0 0.0
    %238 = vmatprep.subr.mxu0 0.0
    %239 = vmatpush2.msra.mxu0 0.0
    %240 = vmatprep.subr.mxu0 0.0
    %241 = vmatpush2.msra.mxu0 0.0
    %242 = vmatprep.subr.mxu0 0.0
    %243 = vmatpush2.msra.mxu0 0.0
    %244 = vmatprep.subr.mxu0 0.0
    %245 = vmatpush2.msra.mxu0 0.0
    %246 = vmatprep.subr.mxu0 0.0
    %247 = vmatpush2.msra.mxu0 0.0
    %248 = vmatprep.subr.mxu0 0.0
    %249 = vmatpush2.msra.mxu0 0.0
    %250 = vmatprep.subr.mxu0 0.0
    %251 = vmatpush2.msra.mxu0 0.0
    %252 = vmatprep.subr.mxu0 0.0
    %253 = vmatpush2.msra.mxu0 0.0
    %254 = vmatprep.subr.mxu0 0.0
    %255 = vmatpush2.msra.mxu0 0.0
    %256 = vmatprep.subr.mxu0 0.0
    %257 = vmatpush2.msra.mxu0 0.0
    %258 = vmatprep.subr.mxu0 0.0
    %259 = vmatpush2.msra.mxu0 0.0
    %260 = vmatprep.subr.mxu0 0.0
    %261 = vmatpush2.msra.mxu0 0.0
    %262 = vmatprep.subr.mxu0 0.0
    %263 = vmatpush2.msra.mxu0 0.0
    %264 = vmatprep.mubr.f32.mxu0 0.0
    %265 = vmatmul.mubr.f32.gmra.mxu0 %v189
    %v266 = vpop.f32.mrf.mxu0
    %v267 = vadd.f32 %v170, %v266
    %v268 = vpop.f32.mrf.mxu0
    %269 = vmatprep.mubr.f32.mxu0 0.0
    %270 = vmatmul.mubr.f32.gmra.mxu0 %v192
    %v271 = vpop.f32.mrf.mxu0
    %v272 = vadd.f32 %v175, %v271
    %v273 = vpop.f32.mrf.mxu0
    %274 = vmatprep.mubr.f32.mxu0 0.0
    %275 = vmatmul.mubr.f32.gmra.mxu0 %v195
    %v276 = vpop.f32.mrf.mxu0
    %v277 = vadd.f32 %v180, %v276
    %v278 = vpop.f32.mrf.mxu0
    %279 = vmatprep.mubr.f32.mxu0 0.0
    %280 = vmatmul.mubr.f32.gmra.mxu0 %v198
    %v281 = vpop.f32.mrf.mxu0
    %v282 = vadd.f32 %v185, %v281
    %v283 = vpop.f32.mrf.mxu0
    %284 = vdwg.mxu0
    %v285 = vmax.f32 %v267, 0.0
    %v286 = vmax.f32 %v272, 0.0
    %v287 = vmax.f32 %v277, 0.0
    %v288 = vmax.f32 %v282, 0.0
    %v289 = vld [vmem:[%s5] sm:$0xff]
    %v290 = vld [vmem:[%s5 + $0x8] sm:$0xff]
    %v291 = vld [vmem:[%s5 + $0x10] sm:$0xff]
    %v292 = vld [vmem:[%s5 + $0x18] sm:$0xff]
    %294 = vset.pattern.permute.xlu0 0
    %295 = vperm.xlu0 %294, %v289
    %v296 = vpop.permute.xlu0 %295
    %299 = vset.pattern.permute.xlu0 0
    %300 = vperm.xlu0 %299, %v290
    %v301 = vpop.permute.xlu0 %300
    %304 = vset.pattern.permute.xlu0 0
    %305 = vperm.xlu0 %304, %v291
    %v306 = vpop.permute.xlu0 %305
    %309 = vset.pattern.permute.xlu0 0
    %310 = vperm.xlu0 %309, %v292
    %v311 = vpop.permute.xlu0 %310
    %v313 = vmul.f32 %v285, %v296
    %v314 = vmul.f32 %v286, %v301
    %v315 = vmul.f32 %v287, %v306
    %v316 = vmul.f32 %v288, %v311
    %v317 = vadd.f32 %v313, %v314
    %v318 = vadd.f32 %v317, %v315
    %v319 = vadd.f32 %v318, %v316
    %v320 = vrot.slane %v319, 4
    %v321 = vadd.f32 %v319, %v320
    %v322 = vrot.slane %v321, 2
    %v323 = vadd.f32 %v321, %v322
    %v324 = vrot.slane %v323, 1
    %v325 = vadd.f32 %v323, %v324
    %s326 = sld [smem:[#allocation2]]
    %v327 = vstv %s326
    %v328 = vadd.f32 %v325, %v327
    %329 = vst [vmem:[#allocation3] sm:$0x1] %v328
    // Predicated region
    $region30: #{tpu_custom_call.1} parent=1 // pred_check
      _
    $region31: #{tpu_custom_call.1} parent=1 // pred_check_branch
      %331 = sbr.rel (0) target = $region33
    $region32: #{tpu_custom_call.1} parent=1 // pred_region
      %s333 = ssub.s32 16, 16
      %334 = vsyncadd [#allocation4], %s333
      %s336 = sshll.u32 [#allocation3], 4
      %s337 = int_to_ptr.vmem [resolvable:$true] %s336
      %339 = dma.vmem_to_hbm [thread:$0]  %s337, 16, %s7, [#allocation4]
    $region33: #{tpu_custom_call.1} parent=1 // pred_fallthru
      _
    // Predicated region
    $region34: #{tpu_custom_call.1} parent=1 // pred_check
      _
    $region35: #{tpu_custom_call.1} parent=1 // pred_check_branch
      %341 = sbr.rel (0) target = $region37
    $region36: #{tpu_custom_call.1} parent=1 // pred_region
      %342 = dma.done [#allocation4], 16
    $region37: #{tpu_custom_call.1} parent=1 // pred_fallthru
      _
    %343 = vsyncpa [#allocation4], 1

</llo_original>
